<compile_context>
chip_gen: v5e
topology: v5e:2x2
jax: 0.10.0
libtpu: 0.0.40
codegen_flags: <defaults>
</compile_context>

<pallas_src>
import functools

import jax
import jax.numpy as jnp
from jax.experimental import pallas as pl
from jax.experimental.pallas import tpu as pltpu

# ------------------------- model hyperparameters ----------------------------
IN_DIM = 32        # in_dim
FF_DIM = 128       # in_fnn_dims / compare_fnn_dims width
OUT_DIM = 64       # conf['out_dim']
HEAD_PAD = 128     # head zero-padded to a full lane group (unmasked stores)
TEMPERATURE = 1.5  # conf['temperature']
LN_EPS = 1e-5

# ------------------------------ math helpers --------------------------------


def _gelu(v):
    # tanh-approximation GELU (EUP tanh).  PyTorch nn.GELU() default is the
    # exact erf form; the tanh approximation matches to ~1e-3.
    c = 0.7978845608028654  # sqrt(2/pi)
    return 0.5 * v * (1.0 + jnp.tanh(c * (v + 0.044715 * v * v * v)))


def _layernorm(v):
    # LayerNorm WITHOUT affine: gamma/beta are folded into the next layer's
    # weights/bias at inference time (see fold_params).
    mu = jnp.mean(v, axis=-1, keepdims=True)
    d = v - mu
    var = jnp.mean(d * d, axis=-1, keepdims=True)
    return d * jax.lax.rsqrt(var + LN_EPS)


# ------------------------------ kernel ---------------------------------------


def output_head_kernel(r_ref, d_ref, w0_ref, w1_ref, wcr_ref, wcd_ref,
                       wo_ref, vec_ref, o_ref):
    w0 = w0_ref[...]          # (IN_DIM, FF)  bf16
    w1 = w1_ref[...]          # (FF, FF)      bf16, LN0 affine folded in
    b0 = vec_ref[0:1, :]      # (1, FF)       f32
    b1 = vec_ref[1:2, :]      # (1, FF)       f32 (beta0 folded in)
    bc = vec_ref[2:3, :]      # (1, FF)       f32 (beta1 folded in)
    bo = vec_ref[3:4, :]      # (1, HEAD_PAD) f32 (bias / temperature, zero-padded)

    def in_fnn(x):
        # (SparseConnectedLayer -> GELU -> LayerNorm) x2; dropout = identity.
        h = jnp.dot(x.astype(jnp.bfloat16), w0,
                    preferred_element_type=jnp.float32) + b0
        h = _layernorm(_gelu(h))
        h = jnp.dot(h.astype(jnp.bfloat16), w1,
                    preferred_element_type=jnp.float32) + b1
        h = _layernorm(_gelu(h))
        return h.astype(jnp.bfloat16)

    hr = in_fnn(r_ref[...])
    hd = in_fnn(d_ref[...])

    # compare_fnn layer 0: SCL(2*FF, FF) on concat([r, d], -1), expressed as two
    # FFxFF matmuls (avoids an in-kernel lane concat), then GELU.
    c = (jnp.dot(hr, wcr_ref[...], preferred_element_type=jnp.float32)
         + jnp.dot(hd, wcd_ref[...], preferred_element_type=jnp.float32)
         + bc)
    c = _gelu(c)

    # Final Linear(FF, OUT_DIM) with 1/temperature folded into the weights; the
    # weight is zero-padded to HEAD_PAD columns so the store is lane-dense.
    out = jnp.dot(c.astype(jnp.bfloat16), wo_ref[...],
                  preferred_element_type=jnp.float32) + bo
    o_ref[...] = out.astype(o_ref.dtype)


# ------------------------------ wrapper --------------------------------------


def _round_up(x, m):
    return ((x + m - 1) // m) * m


def fold_params(params):
    """Inference-time preprocessing: fold LayerNorm affines and 1/temperature
    into the following layers, pad the head to HEAD_PAD lanes, cast weights to
    bf16 and pack the per-feature bias vectors into one (4, 128) array."""
    (w0, b0, g0, bt0, w1, b1, g1, bt1, wc, bc, wo, bo) = params

    # LN0 affine -> in_fnn layer 1
    w1f = g0[:, None] * w1
    b1f = b1 + bt0 @ w1
    # LN1 affine -> compare layer (split Wc into radiant/dire halves of the concat)
    wcr = g1[:, None] * wc[:FF_DIM]
    wcd = g1[:, None] * wc[FF_DIM:]
    bcf = bc + bt1 @ (wc[:FF_DIM] + wc[FF_DIM:])
    # 1/temperature -> output head; pad head to HEAD_PAD output lanes
    wof = jnp.concatenate(
        [wo, jnp.zeros((FF_DIM, HEAD_PAD - OUT_DIM), wo.dtype)], axis=1) / TEMPERATURE
    bof = jnp.concatenate(
        [bo, jnp.zeros((HEAD_PAD - OUT_DIM,), bo.dtype)]) / TEMPERATURE

    vecs = jnp.stack([b0, b1f, bcf, bof]).astype(jnp.float32)   # (4, 128)
    bf16 = lambda a: a.astype(jnp.bfloat16)
    return (bf16(w0), bf16(w1f), bf16(wcr), bf16(wcd), bf16(wof), vecs)


@functools.partial(jax.jit, static_argnames=("tm",))
def output_head(radiant, dire, folded_params, *, tm=512):
    """radiant, dire: (B, IN_DIM) f32 -> (B, OUT_DIM) f32 (already / temperature)."""
    assert radiant.shape == dire.shape and radiant.shape[-1] == IN_DIM
    assert tm % 8 == 0
    B = radiant.shape[0]
    (w0, w1, wcr, wcd, wo, vecs) = folded_params

    # Row tile: as large as `tm`, but keep >=2 grid steps when the batch allows
    # (so v7x's two TensorCores both get work); always a multiple of 8.
    rows = _round_up(B, 8)
    tm_eff = min(tm, max(8, _round_up((rows + 1) // 2, 8)))
    M = _round_up(B, tm_eff)
    if M != B:
        pad = ((0, M - B), (0, 0))
        radiant = jnp.pad(radiant, pad)
        dire = jnp.pad(dire, pad)

    def rep(arr):
        nd = arr.ndim
        return pl.BlockSpec(arr.shape, lambda i, _nd=nd: (0,) * _nd)

    out = pl.pallas_call(
        output_head_kernel,
        out_shape=jax.ShapeDtypeStruct((M, HEAD_PAD), radiant.dtype),
        grid=(M // tm_eff,),
        in_specs=[
            pl.BlockSpec((tm_eff, IN_DIM), lambda i: (i, 0)),   # radiant rows
            pl.BlockSpec((tm_eff, IN_DIM), lambda i: (i, 0)),   # dire rows
            rep(w0), rep(w1), rep(wcr), rep(wcd), rep(wo), rep(vecs),
        ],
        out_specs=pl.BlockSpec((tm_eff, HEAD_PAD), lambda i: (i, 0)),
        compiler_params=pltpu.CompilerParams(
            dimension_semantics=("parallel",)),
    )(radiant, dire, w0, w1, wcr, wcd, wo, vecs)

    return out[:B, :OUT_DIM]


# ------------------------- reference & init ----------------------------------


def reference_forward(radiant, dire, params):
    """Pure-JAX, full-f32 mirror of the PyTorch forward (linear variant)."""
    (w0, b0, g0, bt0, w1, b1, g1, bt1, wc, bc, wo, bo) = params

    def ln_affine(v, g, bt):
        mu = jnp.mean(v, -1, keepdims=True)
        d = v - mu
        var = jnp.mean(d * d, -1, keepdims=True)
        return d * jax.lax.rsqrt(var + LN_EPS) * g + bt

    def in_fnn(x):
        h = ln_affine(_gelu(x @ w0 + b0), g0, bt0)
        h = ln_affine(_gelu(h @ w1 + b1), g1, bt1)
        return h

    r, d = in_fnn(radiant), in_fnn(dire)
    cat = jnp.concatenate([r, d], axis=1)
    c = _gelu(cat @ wc + bc)
    return (c @ wo + bo) / TEMPERATURE


def init_params(key):
    """Deterministic parameter init (uniform fan-in scaling; non-trivial LN affine
    so the inference-time folding is exercised).  Weights stored as (in, out)
    i.e. transposed relative to nn.Linear, so the kernel computes x @ W."""
    ks = jax.random.split(key, 12)

    def linear(kw, kb, fan_in, fan_out):
        lim = 1.0 / jnp.sqrt(fan_in)
        w = jax.random.uniform(kw, (fan_in, fan_out), jnp.float32, -lim, lim)
        b = jax.random.uniform(kb, (fan_out,), jnp.float32, -lim, lim)
        return w, b

    w0, b0 = linear(ks[0], ks[1], IN_DIM, FF_DIM)        # in_fnn SCL 0
    w1, b1 = linear(ks[2], ks[3], FF_DIM, FF_DIM)        # in_fnn SCL 1
    wc, bc = linear(ks[4], ks[5], 2 * FF_DIM, FF_DIM)    # compare_fnn SCL
    wo, bo = linear(ks[6], ks[7], FF_DIM, OUT_DIM)       # compare_fnn out Linear
    g0 = 1.0 + 0.1 * jax.random.normal(ks[8], (FF_DIM,), jnp.float32)
    bt0 = 0.1 * jax.random.normal(ks[9], (FF_DIM,), jnp.float32)
    g1 = 1.0 + 0.1 * jax.random.normal(ks[10], (FF_DIM,), jnp.float32)
    bt1 = 0.1 * jax.random.normal(ks[11], (FF_DIM,), jnp.float32)
    return (w0, b0, g0, bt0, w1, b1, g1, bt1, wc, bc, wo, bo)


# TODO(synk): emb_storage side outputs (radiant/dire/compared embeddings),
# the 'transformer' / 'subtract' compare_encoder variants, and training-mode
# Dropout / DropConnect (pw, pb) are not implemented (inference 'linear' path).

if __name__ == "__main__":
    key = jax.random.PRNGKey(0)
    kr, kd, kp = jax.random.split(key, 3)

    B = 8
    radiant = jax.random.normal(kr, (B, IN_DIM), jnp.float32)
    dire = jax.random.normal(kd, (B, IN_DIM), jnp.float32)

    params = init_params(kp)
    folded = fold_params(params)

    out = output_head(radiant, dire, folded)
    out = jax.block_until_ready(out)

    assert out.shape == (B, OUT_DIM)
    assert bool(jnp.all(jnp.isfinite(out)))

    ref = reference_forward(radiant, dire, params)
    err = float(jnp.max(jnp.abs(out - ref)))
    assert bool(jnp.allclose(out, ref, atol=5e-2, rtol=5e-2)), err
    print("KERNEL_OK")
</pallas_src>

<mosaic_0001>
module attributes {stable_mosaic.version = 11 : i64} {
  func.func @output_head_kernel(%arg0: i32, %arg1: memref<8x32xf32, #tpu.memory_space<vmem>>, %arg2: memref<8x32xf32, #tpu.memory_space<vmem>>, %arg3: memref<32x128xbf16, #tpu.memory_space<vmem>>, %arg4: memref<128x128xbf16, #tpu.memory_space<vmem>>, %arg5: memref<128x128xbf16, #tpu.memory_space<vmem>>, %arg6: memref<128x128xbf16, #tpu.memory_space<vmem>>, %arg7: memref<128x128xbf16, #tpu.memory_space<vmem>>, %arg8: memref<4x128xf32, #tpu.memory_space<vmem>>, %arg9: memref<8x128xf32, #tpu.memory_space<vmem>>) attributes {dimension_semantics = [#tpu.dimension_semantics<parallel>], iteration_bounds = array<i64: 1>, scalar_prefetch = 0 : i64, scratch_operands = 0 : i64, tpu.core_type = #tpu.core_type<tc>, window_params = [{transform_indices = @transform_0, window_bounds = array<i64: 8, 32>}, {transform_indices = @transform_1, window_bounds = array<i64: 8, 32>}, {pipeline_mode = #tpu.pipeline_mode<synchronous>, transform_indices = @transform_2, window_bounds = array<i64: 32, 128>}, {pipeline_mode = #tpu.pipeline_mode<synchronous>, transform_indices = @transform_3, window_bounds = array<i64: 128, 128>}, {pipeline_mode = #tpu.pipeline_mode<synchronous>, transform_indices = @transform_4, window_bounds = array<i64: 128, 128>}, {pipeline_mode = #tpu.pipeline_mode<synchronous>, transform_indices = @transform_5, window_bounds = array<i64: 128, 128>}, {pipeline_mode = #tpu.pipeline_mode<synchronous>, transform_indices = @transform_6, window_bounds = array<i64: 128, 128>}, {pipeline_mode = #tpu.pipeline_mode<synchronous>, transform_indices = @transform_7, window_bounds = array<i64: 4, 128>}, {transform_indices = @transform_8, window_bounds = array<i64: 8, 128>}]} {
    %c0 = arith.constant 0 : index
    %c0_0 = arith.constant 0 : index
    %0 = vector.load %arg3[%c0, %c0_0] : memref<32x128xbf16, #tpu.memory_space<vmem>>, vector<32x128xbf16>
    %c0_1 = arith.constant 0 : index
    %c0_2 = arith.constant 0 : index
    %1 = vector.load %arg4[%c0_1, %c0_2] : memref<128x128xbf16, #tpu.memory_space<vmem>>, vector<128x128xbf16>
    %c0_3 = arith.constant 0 : index
    %c0_4 = arith.constant 0 : index
    %2 = vector.load %arg8[%c0_3, %c0_4] : memref<4x128xf32, #tpu.memory_space<vmem>>, vector<1x128xf32>
    %c1 = arith.constant 1 : index
    %c0_5 = arith.constant 0 : index
    %3 = vector.load %arg8[%c1, %c0_5] : memref<4x128xf32, #tpu.memory_space<vmem>>, vector<1x128xf32>
    %c2 = arith.constant 2 : index
    %c0_6 = arith.constant 0 : index
    %4 = vector.load %arg8[%c2, %c0_6] : memref<4x128xf32, #tpu.memory_space<vmem>>, vector<1x128xf32>
    %c3 = arith.constant 3 : index
    %c0_7 = arith.constant 0 : index
    %5 = vector.load %arg8[%c3, %c0_7] : memref<4x128xf32, #tpu.memory_space<vmem>>, vector<1x128xf32>
    %c0_8 = arith.constant 0 : index
    %c0_9 = arith.constant 0 : index
    %6 = vector.load %arg1[%c0_8, %c0_9] : memref<8x32xf32, #tpu.memory_space<vmem>>, vector<8x32xf32>
    %7 = arith.truncf %6 : vector<8x32xf32> to vector<8x32xbf16>
    %cst = arith.constant dense<0.000000e+00> : vector<8x128xf32>
    %8 = tpu.matmul %7, %0, %cst {dimension_numbers = #tpu.dot_dimension_numbers<[1], [0], [0], [1], [0, 0, 1, 1], [], []>} : vector<8x32xbf16>, vector<32x128xbf16>, vector<8x128xf32> -> vector<8x128xf32>
    %9 = vector.broadcast %2 : vector<1x128xf32> to vector<8x128xf32>
    %10 = arith.addf %8, %9 : vector<8x128xf32>
    %cst_10 = arith.constant 5.000000e-01 : f32
    %11 = vector.broadcast %cst_10 : f32 to vector<8x128xf32>
    %12 = arith.mulf %11, %10 : vector<8x128xf32>
    %cst_11 = arith.constant 4.471500e-02 : f32
    %13 = vector.broadcast %cst_11 : f32 to vector<8x128xf32>
    %14 = arith.mulf %13, %10 : vector<8x128xf32>
    %15 = arith.mulf %14, %10 : vector<8x128xf32>
    %16 = arith.mulf %15, %10 : vector<8x128xf32>
    %17 = arith.addf %10, %16 : vector<8x128xf32>
    %cst_12 = arith.constant 0.797884583 : f32
    %18 = vector.broadcast %cst_12 : f32 to vector<8x128xf32>
    %19 = arith.mulf %18, %17 : vector<8x128xf32>
    %20 = math.tanh %19 : vector<8x128xf32>
    %cst_13 = arith.constant 1.000000e+00 : f32
    %21 = vector.broadcast %cst_13 : f32 to vector<8x128xf32>
    %22 = arith.addf %21, %20 : vector<8x128xf32>
    %23 = arith.mulf %12, %22 : vector<8x128xf32>
    %cst_14 = arith.constant dense<0.000000e+00> : vector<8xf32>
    %24 = vector.multi_reduction <add>, %23, %cst_14 [1] : vector<8x128xf32> to vector<8xf32>
    %25 = vector.shape_cast %24 : vector<8xf32> to vector<8x1xf32>
    %cst_15 = arith.constant 1.280000e+02 : f32
    %26 = vector.broadcast %cst_15 : f32 to vector<8x1xf32>
    %27 = arith.divf %25, %26 : vector<8x1xf32>
    %28 = vector.broadcast %27 : vector<8x1xf32> to vector<8x128xf32>
    %29 = arith.subf %23, %28 : vector<8x128xf32>
    %30 = arith.mulf %29, %29 : vector<8x128xf32>
    %cst_16 = arith.constant dense<0.000000e+00> : vector<8xf32>
    %31 = vector.multi_reduction <add>, %30, %cst_16 [1] : vector<8x128xf32> to vector<8xf32>
    %32 = vector.shape_cast %31 : vector<8xf32> to vector<8x1xf32>
    %cst_17 = arith.constant 1.280000e+02 : f32
    %33 = vector.broadcast %cst_17 : f32 to vector<8x1xf32>
    %34 = arith.divf %32, %33 : vector<8x1xf32>
    %cst_18 = arith.constant 9.99999974E-6 : f32
    %35 = vector.broadcast %cst_18 : f32 to vector<8x1xf32>
    %36 = arith.addf %34, %35 : vector<8x1xf32>
    %37 = math.rsqrt %36 : vector<8x1xf32>
    %38 = vector.broadcast %37 : vector<8x1xf32> to vector<8x128xf32>
    %39 = arith.mulf %29, %38 : vector<8x128xf32>
    %40 = arith.truncf %39 : vector<8x128xf32> to vector<8x128xbf16>
    %cst_19 = arith.constant dense<0.000000e+00> : vector<8x128xf32>
    %41 = tpu.matmul %40, %1, %cst_19 {dimension_numbers = #tpu.dot_dimension_numbers<[1], [0], [0], [1], [0, 0, 1, 1], [], []>} : vector<8x128xbf16>, vector<128x128xbf16>, vector<8x128xf32> -> vector<8x128xf32>
    %42 = vector.broadcast %3 : vector<1x128xf32> to vector<8x128xf32>
    %43 = arith.addf %41, %42 : vector<8x128xf32>
    %cst_20 = arith.constant 5.000000e-01 : f32
    %44 = vector.broadcast %cst_20 : f32 to vector<8x128xf32>
    %45 = arith.mulf %44, %43 : vector<8x128xf32>
    %cst_21 = arith.constant 4.471500e-02 : f32
    %46 = vector.broadcast %cst_21 : f32 to vector<8x128xf32>
    %47 = arith.mulf %46, %43 : vector<8x128xf32>
    %48 = arith.mulf %47, %43 : vector<8x128xf32>
    %49 = arith.mulf %48, %43 : vector<8x128xf32>
    %50 = arith.addf %43, %49 : vector<8x128xf32>
    %cst_22 = arith.constant 0.797884583 : f32
    %51 = vector.broadcast %cst_22 : f32 to vector<8x128xf32>
    %52 = arith.mulf %51, %50 : vector<8x128xf32>
    %53 = math.tanh %52 : vector<8x128xf32>
    %cst_23 = arith.constant 1.000000e+00 : f32
    %54 = vector.broadcast %cst_23 : f32 to vector<8x128xf32>
    %55 = arith.addf %54, %53 : vector<8x128xf32>
    %56 = arith.mulf %45, %55 : vector<8x128xf32>
    %cst_24 = arith.constant dense<0.000000e+00> : vector<8xf32>
    %57 = vector.multi_reduction <add>, %56, %cst_24 [1] : vector<8x128xf32> to vector<8xf32>
    %58 = vector.shape_cast %57 : vector<8xf32> to vector<8x1xf32>
    %cst_25 = arith.constant 1.280000e+02 : f32
    %59 = vector.broadcast %cst_25 : f32 to vector<8x1xf32>
    %60 = arith.divf %58, %59 : vector<8x1xf32>
    %61 = vector.broadcast %60 : vector<8x1xf32> to vector<8x128xf32>
    %62 = arith.subf %56, %61 : vector<8x128xf32>
    %63 = arith.mulf %62, %62 : vector<8x128xf32>
    %cst_26 = arith.constant dense<0.000000e+00> : vector<8xf32>
    %64 = vector.multi_reduction <add>, %63, %cst_26 [1] : vector<8x128xf32> to vector<8xf32>
    %65 = vector.shape_cast %64 : vector<8xf32> to vector<8x1xf32>
    %cst_27 = arith.constant 1.280000e+02 : f32
    %66 = vector.broadcast %cst_27 : f32 to vector<8x1xf32>
    %67 = arith.divf %65, %66 : vector<8x1xf32>
    %cst_28 = arith.constant 9.99999974E-6 : f32
    %68 = vector.broadcast %cst_28 : f32 to vector<8x1xf32>
    %69 = arith.addf %67, %68 : vector<8x1xf32>
    %70 = math.rsqrt %69 : vector<8x1xf32>
    %71 = vector.broadcast %70 : vector<8x1xf32> to vector<8x128xf32>
    %72 = arith.mulf %62, %71 : vector<8x128xf32>
    %73 = arith.truncf %72 : vector<8x128xf32> to vector<8x128xbf16>
    %c0_29 = arith.constant 0 : index
    %c0_30 = arith.constant 0 : index
    %74 = vector.load %arg2[%c0_29, %c0_30] : memref<8x32xf32, #tpu.memory_space<vmem>>, vector<8x32xf32>
    %75 = arith.truncf %74 : vector<8x32xf32> to vector<8x32xbf16>
    %cst_31 = arith.constant dense<0.000000e+00> : vector<8x128xf32>
    %76 = tpu.matmul %75, %0, %cst_31 {dimension_numbers = #tpu.dot_dimension_numbers<[1], [0], [0], [1], [0, 0, 1, 1], [], []>} : vector<8x32xbf16>, vector<32x128xbf16>, vector<8x128xf32> -> vector<8x128xf32>
    %77 = vector.broadcast %2 : vector<1x128xf32> to vector<8x128xf32>
    %78 = arith.addf %76, %77 : vector<8x128xf32>
    %cst_32 = arith.constant 5.000000e-01 : f32
    %79 = vector.broadcast %cst_32 : f32 to vector<8x128xf32>
    %80 = arith.mulf %79, %78 : vector<8x128xf32>
    %cst_33 = arith.constant 4.471500e-02 : f32
    %81 = vector.broadcast %cst_33 : f32 to vector<8x128xf32>
    %82 = arith.mulf %81, %78 : vector<8x128xf32>
    %83 = arith.mulf %82, %78 : vector<8x128xf32>
    %84 = arith.mulf %83, %78 : vector<8x128xf32>
    %85 = arith.addf %78, %84 : vector<8x128xf32>
    %cst_34 = arith.constant 0.797884583 : f32
    %86 = vector.broadcast %cst_34 : f32 to vector<8x128xf32>
    %87 = arith.mulf %86, %85 : vector<8x128xf32>
    %88 = math.tanh %87 : vector<8x128xf32>
    %cst_35 = arith.constant 1.000000e+00 : f32
    %89 = vector.broadcast %cst_35 : f32 to vector<8x128xf32>
    %90 = arith.addf %89, %88 : vector<8x128xf32>
    %91 = arith.mulf %80, %90 : vector<8x128xf32>
    %cst_36 = arith.constant dense<0.000000e+00> : vector<8xf32>
    %92 = vector.multi_reduction <add>, %91, %cst_36 [1] : vector<8x128xf32> to vector<8xf32>
    %93 = vector.shape_cast %92 : vector<8xf32> to vector<8x1xf32>
    %cst_37 = arith.constant 1.280000e+02 : f32
    %94 = vector.broadcast %cst_37 : f32 to vector<8x1xf32>
    %95 = arith.divf %93, %94 : vector<8x1xf32>
    %96 = vector.broadcast %95 : vector<8x1xf32> to vector<8x128xf32>
    %97 = arith.subf %91, %96 : vector<8x128xf32>
    %98 = arith.mulf %97, %97 : vector<8x128xf32>
    %cst_38 = arith.constant dense<0.000000e+00> : vector<8xf32>
    %99 = vector.multi_reduction <add>, %98, %cst_38 [1] : vector<8x128xf32> to vector<8xf32>
    %100 = vector.shape_cast %99 : vector<8xf32> to vector<8x1xf32>
    %cst_39 = arith.constant 1.280000e+02 : f32
    %101 = vector.broadcast %cst_39 : f32 to vector<8x1xf32>
    %102 = arith.divf %100, %101 : vector<8x1xf32>
    %cst_40 = arith.constant 9.99999974E-6 : f32
    %103 = vector.broadcast %cst_40 : f32 to vector<8x1xf32>
    %104 = arith.addf %102, %103 : vector<8x1xf32>
    %105 = math.rsqrt %104 : vector<8x1xf32>
    %106 = vector.broadcast %105 : vector<8x1xf32> to vector<8x128xf32>
    %107 = arith.mulf %97, %106 : vector<8x128xf32>
    %108 = arith.truncf %107 : vector<8x128xf32> to vector<8x128xbf16>
    %cst_41 = arith.constant dense<0.000000e+00> : vector<8x128xf32>
    %109 = tpu.matmul %108, %1, %cst_41 {dimension_numbers = #tpu.dot_dimension_numbers<[1], [0], [0], [1], [0, 0, 1, 1], [], []>} : vector<8x128xbf16>, vector<128x128xbf16>, vector<8x128xf32> -> vector<8x128xf32>
    %110 = vector.broadcast %3 : vector<1x128xf32> to vector<8x128xf32>
    %111 = arith.addf %109, %110 : vector<8x128xf32>
    %cst_42 = arith.constant 5.000000e-01 : f32
    %112 = vector.broadcast %cst_42 : f32 to vector<8x128xf32>
    %113 = arith.mulf %112, %111 : vector<8x128xf32>
    %cst_43 = arith.constant 4.471500e-02 : f32
    %114 = vector.broadcast %cst_43 : f32 to vector<8x128xf32>
    %115 = arith.mulf %114, %111 : vector<8x128xf32>
    %116 = arith.mulf %115, %111 : vector<8x128xf32>
    %117 = arith.mulf %116, %111 : vector<8x128xf32>
    %118 = arith.addf %111, %117 : vector<8x128xf32>
    %cst_44 = arith.constant 0.797884583 : f32
    %119 = vector.broadcast %cst_44 : f32 to vector<8x128xf32>
    %120 = arith.mulf %119, %118 : vector<8x128xf32>
    %121 = math.tanh %120 : vector<8x128xf32>
    %cst_45 = arith.constant 1.000000e+00 : f32
    %122 = vector.broadcast %cst_45 : f32 to vector<8x128xf32>
    %123 = arith.addf %122, %121 : vector<8x128xf32>
    %124 = arith.mulf %113, %123 : vector<8x128xf32>
    %cst_46 = arith.constant dense<0.000000e+00> : vector<8xf32>
    %125 = vector.multi_reduction <add>, %124, %cst_46 [1] : vector<8x128xf32> to vector<8xf32>
    %126 = vector.shape_cast %125 : vector<8xf32> to vector<8x1xf32>
    %cst_47 = arith.constant 1.280000e+02 : f32
    %127 = vector.broadcast %cst_47 : f32 to vector<8x1xf32>
    %128 = arith.divf %126, %127 : vector<8x1xf32>
    %129 = vector.broadcast %128 : vector<8x1xf32> to vector<8x128xf32>
    %130 = arith.subf %124, %129 : vector<8x128xf32>
    %131 = arith.mulf %130, %130 : vector<8x128xf32>
    %cst_48 = arith.constant dense<0.000000e+00> : vector<8xf32>
    %132 = vector.multi_reduction <add>, %131, %cst_48 [1] : vector<8x128xf32> to vector<8xf32>
    %133 = vector.shape_cast %132 : vector<8xf32> to vector<8x1xf32>
    %cst_49 = arith.constant 1.280000e+02 : f32
    %134 = vector.broadcast %cst_49 : f32 to vector<8x1xf32>
    %135 = arith.divf %133, %134 : vector<8x1xf32>
    %cst_50 = arith.constant 9.99999974E-6 : f32
    %136 = vector.broadcast %cst_50 : f32 to vector<8x1xf32>
    %137 = arith.addf %135, %136 : vector<8x1xf32>
    %138 = math.rsqrt %137 : vector<8x1xf32>
    %139 = vector.broadcast %138 : vector<8x1xf32> to vector<8x128xf32>
    %140 = arith.mulf %130, %139 : vector<8x128xf32>
    %141 = arith.truncf %140 : vector<8x128xf32> to vector<8x128xbf16>
    %c0_51 = arith.constant 0 : index
    %c0_52 = arith.constant 0 : index
    %142 = vector.load %arg5[%c0_51, %c0_52] : memref<128x128xbf16, #tpu.memory_space<vmem>>, vector<128x128xbf16>
    %cst_53 = arith.constant dense<0.000000e+00> : vector<8x128xf32>
    %143 = tpu.matmul %73, %142, %cst_53 {dimension_numbers = #tpu.dot_dimension_numbers<[1], [0], [0], [1], [0, 0, 1, 1], [], []>} : vector<8x128xbf16>, vector<128x128xbf16>, vector<8x128xf32> -> vector<8x128xf32>
    %c0_54 = arith.constant 0 : index
    %c0_55 = arith.constant 0 : index
    %144 = vector.load %arg6[%c0_54, %c0_55] : memref<128x128xbf16, #tpu.memory_space<vmem>>, vector<128x128xbf16>
    %cst_56 = arith.constant dense<0.000000e+00> : vector<8x128xf32>
    %145 = tpu.matmul %141, %144, %cst_56 {dimension_numbers = #tpu.dot_dimension_numbers<[1], [0], [0], [1], [0, 0, 1, 1], [], []>} : vector<8x128xbf16>, vector<128x128xbf16>, vector<8x128xf32> -> vector<8x128xf32>
    %146 = arith.addf %143, %145 : vector<8x128xf32>
    %147 = vector.broadcast %4 : vector<1x128xf32> to vector<8x128xf32>
    %148 = arith.addf %146, %147 : vector<8x128xf32>
    %cst_57 = arith.constant 5.000000e-01 : f32
    %149 = vector.broadcast %cst_57 : f32 to vector<8x128xf32>
    %150 = arith.mulf %149, %148 : vector<8x128xf32>
    %cst_58 = arith.constant 4.471500e-02 : f32
    %151 = vector.broadcast %cst_58 : f32 to vector<8x128xf32>
    %152 = arith.mulf %151, %148 : vector<8x128xf32>
    %153 = arith.mulf %152, %148 : vector<8x128xf32>
    %154 = arith.mulf %153, %148 : vector<8x128xf32>
    %155 = arith.addf %148, %154 : vector<8x128xf32>
    %cst_59 = arith.constant 0.797884583 : f32
    %156 = vector.broadcast %cst_59 : f32 to vector<8x128xf32>
    %157 = arith.mulf %156, %155 : vector<8x128xf32>
    %158 = math.tanh %157 : vector<8x128xf32>
    %cst_60 = arith.constant 1.000000e+00 : f32
    %159 = vector.broadcast %cst_60 : f32 to vector<8x128xf32>
    %160 = arith.addf %159, %158 : vector<8x128xf32>
    %161 = arith.mulf %150, %160 : vector<8x128xf32>
    %162 = arith.truncf %161 : vector<8x128xf32> to vector<8x128xbf16>
    %c0_61 = arith.constant 0 : index
    %c0_62 = arith.constant 0 : index
    %163 = vector.load %arg7[%c0_61, %c0_62] : memref<128x128xbf16, #tpu.memory_space<vmem>>, vector<128x128xbf16>
    %cst_63 = arith.constant dense<0.000000e+00> : vector<8x128xf32>
    %164 = tpu.matmul %162, %163, %cst_63 {dimension_numbers = #tpu.dot_dimension_numbers<[1], [0], [0], [1], [0, 0, 1, 1], [], []>} : vector<8x128xbf16>, vector<128x128xbf16>, vector<8x128xf32> -> vector<8x128xf32>
    %165 = vector.broadcast %5 : vector<1x128xf32> to vector<8x128xf32>
    %166 = arith.addf %164, %165 : vector<8x128xf32>
    %c0_64 = arith.constant 0 : index
    %c0_65 = arith.constant 0 : index
    %167 = vector.load %arg9[%c0_64, %c0_65] : memref<8x128xf32, #tpu.memory_space<vmem>>, vector<8x128xf32>
    tpu.vector_store %arg9[%c0_64, %c0_65], %166 {strides = array<i32>} : memref<8x128xf32, #tpu.memory_space<vmem>>, vector<8x128xf32>,
    return
  }
  func.func @transform_0(%arg0: i32) -> (i32, i32) {
    %c0_i32 = arith.constant 0 : i32
    %c0_i32_0 = arith.constant 0 : i32
    return %arg0, %c0_i32 : i32, i32
  }
  func.func @transform_1(%arg0: i32) -> (i32, i32) {
    %c0_i32 = arith.constant 0 : i32
    %c0_i32_0 = arith.constant 0 : i32
    return %arg0, %c0_i32 : i32, i32
  }
  func.func @transform_2(%arg0: i32) -> (i32, i32) {
    %c0_i32 = arith.constant 0 : i32
    %c0_i32_0 = arith.constant 0 : i32
    %c0_i32_1 = arith.constant 0 : i32
    return %c0_i32, %c0_i32_0 : i32, i32
  }
  func.func @transform_3(%arg0: i32) -> (i32, i32) {
    %c0_i32 = arith.constant 0 : i32
    %c0_i32_0 = arith.constant 0 : i32
    %c0_i32_1 = arith.constant 0 : i32
    return %c0_i32, %c0_i32_0 : i32, i32
  }
  func.func @transform_4(%arg0: i32) -> (i32, i32) {
    %c0_i32 = arith.constant 0 : i32
    %c0_i32_0 = arith.constant 0 : i32
    %c0_i32_1 = arith.constant 0 : i32
    return %c0_i32, %c0_i32_0 : i32, i32
  }
  func.func @transform_5(%arg0: i32) -> (i32, i32) {
    %c0_i32 = arith.constant 0 : i32
    %c0_i32_0 = arith.constant 0 : i32
    %c0_i32_1 = arith.constant 0 : i32
    return %c0_i32, %c0_i32_0 : i32, i32
  }
  func.func @transform_6(%arg0: i32) -> (i32, i32) {
    %c0_i32 = arith.constant 0 : i32
    %c0_i32_0 = arith.constant 0 : i32
    %c0_i32_1 = arith.constant 0 : i32
    return %c0_i32, %c0_i32_0 : i32, i32
  }
  func.func @transform_7(%arg0: i32) -> (i32, i32) {
    %c0_i32 = arith.constant 0 : i32
    %c0_i32_0 = arith.constant 0 : i32
    %c0_i32_1 = arith.constant 0 : i32
    return %c0_i32, %c0_i32_0 : i32, i32
  }
  func.func @transform_8(%arg0: i32) -> (i32, i32) {
    %c0_i32 = arith.constant 0 : i32
    %c0_i32_0 = arith.constant 0 : i32
    return %arg0, %c0_i32 : i32, i32
  }
}

</mosaic_0001>

<llo_original>
// kernel: output_head.1
$region0: #{output_head.1}
  #allocation0 [shape = 'u32[]', space=smem, size = 0x4, offset = 0x4, fixed_abs, tag = 'smem constant byte address 0x4 - core index']
  #allocation1 [shape = 'u32[72,128]{1,0:T(1,128)}', space=vmem, size = 0x9000, scoped, tag = 'internal scratch']
  %s0 = inlined_call_operand.hbm [shape: f32[8,32], index: 0, kind: input, shape index: {}]
  %s1 = inlined_call_operand.hbm [shape: f32[8,32], index: 1, kind: input, shape index: {}]
  %s2 = inlined_call_operand.hbm [shape: bf16[32,128], index: 2, kind: input, shape index: {}]
  %s3 = inlined_call_operand.hbm [shape: bf16[128,128], index: 3, kind: input, shape index: {}]
  %s4 = inlined_call_operand.hbm [shape: bf16[128,128], index: 4, kind: input, shape index: {}]
  %s5 = inlined_call_operand.hbm [shape: bf16[128,128], index: 5, kind: input, shape index: {}]
  %s6 = inlined_call_operand.hbm [shape: bf16[128,128], index: 6, kind: input, shape index: {}]
  %s7 = inlined_call_operand.vmem [shape: f32[4,128], index: 7, kind: input, shape index: {}]
  %s8 = inlined_call_operand.hbm [shape: f32[8,128], index: 8, kind: output, shape index: {}]
  %s9 = sld [smem:[#allocation0]]
  $region70: #{output_head.1} parent=0
    _
  %s11 = ssub.s32 1, %s9
  %s12 = scalar_select 0, %s11, %s9
  $region1: #{output_head.1} parent=0
    #allocation2 [shape = 'u8[4096]{0}', space=vmem, size = 0x1000, scoped, tag = 'input window, operand 0, single buffered']
    #allocation3 [shape = 's32[1]{0}', space=sflag, size = 0x4, scoped, tag = 'scoped memory for output_head.1']
    #allocation4 [shape = 's32[1]{0}', space=sflag, size = 0x4, scoped, tag = 'scoped memory for output_head.1']
    #allocation5 [shape = 'u8[4096]{0}', space=vmem, size = 0x1000, scoped, tag = 'input window, operand 1, single buffered']
    #allocation6 [shape = 's32[1]{0}', space=sflag, size = 0x4, scoped, tag = 'scoped memory for output_head.1']
    #allocation7 [shape = 'u8[8192]{0}', space=vmem, size = 0x2000, scoped, tag = 'input window, operand 2, single buffered']
    #allocation8 [shape = 'u8[32768]{0}', space=vmem, size = 0x8000, scoped, tag = 'input window, operand 3, single buffered']
    #allocation9 [shape = 's32[1]{0}', space=sflag, size = 0x4, scoped, tag = 'scoped memory for output_head.1']
    #allocation10 [shape = 'u8[32768]{0}', space=vmem, size = 0x8000, scoped, tag = 'input window, operand 4, single buffered']
    #allocation11 [shape = 'u8[32768]{0}', space=vmem, size = 0x8000, scoped, tag = 'input window, operand 5, single buffered']
    #allocation12 [shape = 's32[1]{0}', space=sflag, size = 0x4, scoped, tag = 'scoped memory for output_head.1']
    #allocation13 [shape = 'u8[32768]{0}', space=vmem, size = 0x8000, scoped, tag = 'input window, operand 6, single buffered']
    #allocation14 [shape = 'u8[4096]{0}', space=vmem, size = 0x1000, scoped, tag = 'output window, operand 0, single buffered']
    %13 = vsyncpa [#allocation3], 0
    %14 = vsyncpa [#allocation6], 0
    %15 = vsyncpa [#allocation9], 0
    %16 = vsyncpa [#allocation12], 0
    %17 = vsyncpa [#allocation4], 0
    // Predicated region
    $region2: #{output_head.1} parent=1 // pred_check
      _
    $region3: #{output_head.1} parent=1 // pred_check_branch
      %19 = sbr.rel (0) target = $region5
    $region4: #{output_head.1} parent=1 // pred_region
      %21 = vsyncadd [#allocation3], 0
      %s23 = sshll.u32 %s0, 4
      %s24 = int_to_ptr.hbm [resolvable:$true] %s23
      %s25 = sshll.u32 [#allocation2], 4
      %s26 = int_to_ptr.vmem [resolvable:$true] %s25
      %28 = dma.hbm_to_vmem [thread:$0]  %s24, 128, %s26, [#allocation3]
    $region5: #{output_head.1} parent=1 // pred_fallthru
      _
    // Predicated region
    $region6: #{output_head.1} parent=1 // pred_check
      _
    $region7: #{output_head.1} parent=1 // pred_check_branch
      %30 = sbr.rel (0) target = $region9
    $region8: #{output_head.1} parent=1 // pred_region
      %32 = vsyncadd [#allocation6], 0
      %s34 = sshll.u32 %s1, 4
      %s35 = int_to_ptr.hbm [resolvable:$true] %s34
      %s36 = sshll.u32 [#allocation5], 4
      %s37 = int_to_ptr.vmem [resolvable:$true] %s36
      %39 = dma.hbm_to_vmem [thread:$0]  %s35, 128, %s37, [#allocation6]
    $region9: #{output_head.1} parent=1 // pred_fallthru
      _
    // Predicated region
    $region10: #{output_head.1} parent=1 // pred_check
      _
    $region11: #{output_head.1} parent=1 // pred_check_branch
      %41 = sbr.rel (0) target = $region13
    $region12: #{output_head.1} parent=1 // pred_region
      %43 = vsyncadd [#allocation6], 0
      %s44 = sshll.u32 %s2, 4
      %s45 = int_to_ptr.hbm [resolvable:$true] %s44
      %s46 = sshll.u32 [#allocation7], 4
      %s47 = int_to_ptr.vmem [resolvable:$true] %s46
      %52 = dma.hbm_to_vmem [thread:$0]  %s45, 256, %s47, [#allocation6], 64, 64, 4
    $region13: #{output_head.1} parent=1 // pred_fallthru
      _
    // Predicated region
    $region14: #{output_head.1} parent=1 // pred_check
      _
    $region15: #{output_head.1} parent=1 // pred_check_branch
      %54 = sbr.rel (0) target = $region17
    $region16: #{output_head.1} parent=1 // pred_region
      %56 = vsyncadd [#allocation9], 0
      %s57 = sshll.u32 %s3, 4
      %s58 = int_to_ptr.hbm [resolvable:$true] %s57
      %s59 = sshll.u32 [#allocation8], 4
      %s60 = int_to_ptr.vmem [resolvable:$true] %s59
      %65 = dma.hbm_to_vmem [thread:$0]  %s58, 1024, %s60, [#allocation9], 64, 64, 4
    $region17: #{output_head.1} parent=1 // pred_fallthru
      _
    // Predicated region
    $region18: #{output_head.1} parent=1 // pred_check
      _
    $region19: #{output_head.1} parent=1 // pred_check_branch
      %67 = sbr.rel (0) target = $region21
    $region20: #{output_head.1} parent=1 // pred_region
      %69 = vsyncadd [#allocation9], 0
      %s70 = sshll.u32 %s4, 4
      %s71 = int_to_ptr.hbm [resolvable:$true] %s70
      %s72 = sshll.u32 [#allocation10], 4
      %s73 = int_to_ptr.vmem [resolvable:$true] %s72
      %78 = dma.hbm_to_vmem [thread:$0]  %s71, 1024, %s73, [#allocation9], 64, 64, 4
    $region21: #{output_head.1} parent=1 // pred_fallthru
      _
    // Predicated region
    $region22: #{output_head.1} parent=1 // pred_check
      _
    $region23: #{output_head.1} parent=1 // pred_check_branch
      %80 = sbr.rel (0) target = $region25
    $region24: #{output_head.1} parent=1 // pred_region
      %82 = vsyncadd [#allocation12], 0
      %s83 = sshll.u32 %s5, 4
      %s84 = int_to_ptr.hbm [resolvable:$true] %s83
      %s85 = sshll.u32 [#allocation11], 4
      %s86 = int_to_ptr.vmem [resolvable:$true] %s85
      %91 = dma.hbm_to_vmem [thread:$0]  %s84, 1024, %s86, [#allocation12], 64, 64, 4
    $region25: #{output_head.1} parent=1 // pred_fallthru
      _
    // Predicated region
    $region26: #{output_head.1} parent=1 // pred_check
      _
    $region27: #{output_head.1} parent=1 // pred_check_branch
      %93 = sbr.rel (0) target = $region29
    $region28: #{output_head.1} parent=1 // pred_region
      %95 = vsyncadd [#allocation12], 0
      %s96 = sshll.u32 %s6, 4
      %s97 = int_to_ptr.hbm [resolvable:$true] %s96
      %s98 = sshll.u32 [#allocation13], 4
      %s99 = int_to_ptr.vmem [resolvable:$true] %s98
      %104 = dma.hbm_to_vmem [thread:$0]  %s97, 1024, %s99, [#allocation12], 64, 64, 4
    $region29: #{output_head.1} parent=1 // pred_fallthru
      _
    // Predicated region
    $region30: #{output_head.1} parent=1 // pred_check
      _
    $region31: #{output_head.1} parent=1 // pred_check_branch
      %106 = sbr.rel (0) target = $region33
    $region32: #{output_head.1} parent=1 // pred_region
      _
    $region33: #{output_head.1} parent=1 // pred_fallthru
      _
    // Predicated region
    $region34: #{output_head.1} parent=1 // pred_check
      _
    $region35: #{output_head.1} parent=1 // pred_check_branch
      %108 = sbr.rel (0) target = $region37
    $region36: #{output_head.1} parent=1 // pred_region
      %110 = dma.done [#allocation3], 128
    $region37: #{output_head.1} parent=1 // pred_fallthru
      _
    // Predicated region
    $region38: #{output_head.1} parent=1 // pred_check
      _
    $region39: #{output_head.1} parent=1 // pred_check_branch
      %112 = sbr.rel (0) target = $region41
    $region40: #{output_head.1} parent=1 // pred_region
      %114 = dma.done [#allocation6], 128
    $region41: #{output_head.1} parent=1 // pred_fallthru
      _
    // Predicated region
    $region42: #{output_head.1} parent=1 // pred_check
      _
    $region43: #{output_head.1} parent=1 // pred_check_branch
      %116 = sbr.rel (0) target = $region45
    $region44: #{output_head.1} parent=1 // pred_region
      %118 = dma.done [#allocation6], 256
    $region45: #{output_head.1} parent=1 // pred_fallthru
      _
    // Predicated region
    $region46: #{output_head.1} parent=1 // pred_check
      _
    $region47: #{output_head.1} parent=1 // pred_check_branch
      %120 = sbr.rel (0) target = $region49
    $region48: #{output_head.1} parent=1 // pred_region
      %122 = dma.done [#allocation9], 1024
    $region49: #{output_head.1} parent=1 // pred_fallthru
      _
    // Predicated region
    $region50: #{output_head.1} parent=1 // pred_check
      _
    $region51: #{output_head.1} parent=1 // pred_check_branch
      %124 = sbr.rel (0) target = $region53
    $region52: #{output_head.1} parent=1 // pred_region
      %126 = dma.done [#allocation9], 1024
    $region53: #{output_head.1} parent=1 // pred_fallthru
      _
    // Predicated region
    $region54: #{output_head.1} parent=1 // pred_check
      _
    $region55: #{output_head.1} parent=1 // pred_check_branch
      %128 = sbr.rel (0) target = $region57
    $region56: #{output_head.1} parent=1 // pred_region
      %130 = dma.done [#allocation12], 1024
    $region57: #{output_head.1} parent=1 // pred_fallthru
      _
    // Predicated region
    $region58: #{output_head.1} parent=1 // pred_check
      _
    $region59: #{output_head.1} parent=1 // pred_check_branch
      %132 = sbr.rel (0) target = $region61
    $region60: #{output_head.1} parent=1 // pred_region
      %134 = dma.done [#allocation12], 1024
    $region61: #{output_head.1} parent=1 // pred_fallthru
      _
    %v136 = vld [vmem:[#allocation7] sm:$0xf]
    %v137 = vld [vmem:[#allocation7 + $0x4] sm:$0xf]
    %v138 = vld [vmem:[#allocation7 + $0x8] sm:$0xf]
    %v139 = vld [vmem:[#allocation7 + $0xc] sm:$0xf]
    %v140 = vld [vmem:[#allocation8] sm:$0xf]
    %v141 = vld [vmem:[#allocation8 + $0x4] sm:$0xf]
    %v142 = vld [vmem:[#allocation8 + $0x8] sm:$0xf]
    %v143 = vld [vmem:[#allocation8 + $0xc] sm:$0xf]
    %v144 = vld [vmem:[#allocation8 + $0x10] sm:$0xf]
    %v145 = vld [vmem:[#allocation8 + $0x14] sm:$0xf]
    %v146 = vld [vmem:[#allocation8 + $0x18] sm:$0xf]
    %v147 = vld [vmem:[#allocation8 + $0x1c] sm:$0xf]
    %v148 = vld [vmem:[#allocation8 + $0x20] sm:$0xf]
    %v149 = vld [vmem:[#allocation8 + $0x24] sm:$0xf]
    %v150 = vld [vmem:[#allocation8 + $0x28] sm:$0xf]
    %v151 = vld [vmem:[#allocation8 + $0x2c] sm:$0xf]
    %v152 = vld [vmem:[#allocation8 + $0x30] sm:$0xf]
    %v153 = vld [vmem:[#allocation8 + $0x34] sm:$0xf]
    %v154 = vld [vmem:[#allocation8 + $0x38] sm:$0xf]
    %v155 = vld [vmem:[#allocation8 + $0x3c] sm:$0xf]
    %v156 = vld [vmem:[%s7] sm:$0x1]
    %v157 = vld [vmem:[%s7 + $0x1] sm:$0x1]
    %v158 = vld [vmem:[%s7 + $0x2] sm:$0x1]
    %v159 = vld [vmem:[%s7 + $0x3] sm:$0x1]
    %v160 = vld [vmem:[#allocation2] sm:$0xff]
    %v161 = vpack.c.bf16 %v160, %v160
    %v162 = vperm.slane %v156, 0
    %v167 = vunpack.c.l.b16 %v136
    %v168 = vunpack.c.l.b16 %v137
    %v169 = vunpack.c.l.b16 %v138
    %v170 = vunpack.c.l.b16 %v139
    %v171 = vpack.c.b16 %v168, %v167
    %v172 = vpack.c.b16 %v170, %v169
    %vm175 = vcmask 261120
    %v177 = vsel %vm175, %v161, 0
    %179 = vmatpush.bf16.msra.mxu0 0
    %180 = vmatpush.bf16.msra.mxu0 0
    %181 = vmatpush.bf16.msra.mxu0 0
    %182 = vmatpush.bf16.msra.mxu0 0
    %183 = vmatpush.bf16.msra.mxu0 0
    %184 = vmatpush.bf16.msra.mxu0 0
    %185 = vmatpush.bf16.msra.mxu0 %v172
    %186 = vmatpush.bf16.msra.mxu0 %v171
    %187 = vmatmul.bf16.gmra.mxu0 %v177
    %v188 = vpop.f32.mrf.mxu0
    %v189 = vadd.f32 %v162, %v188
    %v190 = vpop.f32.mrf.mxu0
    %191 = vdwg.mxu0
    %v192 = vmul.f32 %v189, 0.5
    %v193 = vmul.f32 %v189, 0.044715
    %v194 = vmul.f32 %v193, %v189
    %v195 = vmul.f32 %v194, %v189
    %v196 = vadd.f32 %v189, %v195
    %v197 = vmul.f32 %v196, 0.7978846
    %v198 = vtanh.pop %v197
    %v199 = vadd.f32 %v198, 1.0
    %v200 = vmul.f32 %v192, %v199
    %201 = vadd.xlane.f32.xlu0 %v200
    %v202 = vpop.xlane.xlu0 %201
    %v203 = vrcp.pop 128.0
    %v204 = vmul.f32 128.0, %v203
    %v205 = vsub.f32 1.0, %v204
    %v206 = vmul.f32 %v203, %v205
    %v207 = vadd.f32 %v203, %v206
    %vm208 = vweird.f32 %v203
    %v209 = vsel %vm208, %v203, %v207
    %v210 = vmul.f32 %v202, %v209
    %v211 = vsub.f32 %v200, %v210
    %v212 = vmul.f32 %v211, %v211
    %213 = vadd.xlane.f32.xlu0 %v212
    %v214 = vpop.xlane.xlu0 %213
    %v215 = vmul.f32 %v214, %v209
    %v216 = vadd.f32 %v215, 1e-05
    %v217 = vrsqrt.pop %v216
    %v218 = vmul.f32 %v217, %v216
    %v219 = vmul.f32 %v218, %v217
    %v220 = vmul.f32 0.5, %v219
    %v221 = vsub.f32 1.5, %v220
    %v222 = vmul.f32 %v217, %v221
    %vm223 = vweird.f32 %v216
    %vm224 = vweird.f32 %v217
    %vm225 = vmor %vm223, %vm224
    %v226 = vsel %vm225, %v217, %v222
    %v227 = vmul.f32 %v211, %v226
    %v228 = vpack.c.bf16 %v227, %v227
    %v229 = vperm.slane %v157, 0
    %v246 = vunpack.c.l.b16 %v140
    %v247 = vunpack.c.l.b16 %v141
    %v248 = vunpack.c.l.b16 %v142
    %v249 = vunpack.c.l.b16 %v143
    %v250 = vunpack.c.l.b16 %v144
    %v251 = vunpack.c.l.b16 %v145
    %v252 = vunpack.c.l.b16 %v146
    %v253 = vunpack.c.l.b16 %v147
    %v254 = vunpack.c.l.b16 %v148
    %v255 = vunpack.c.l.b16 %v149
    %v256 = vunpack.c.l.b16 %v150
    %v257 = vunpack.c.l.b16 %v151
    %v258 = vunpack.c.l.b16 %v152
    %v259 = vunpack.c.l.b16 %v153
    %v260 = vunpack.c.l.b16 %v154
    %v261 = vunpack.c.l.b16 %v155
    %v262 = vpack.c.b16 %v247, %v246
    %v263 = vpack.c.b16 %v249, %v248
    %v264 = vpack.c.b16 %v251, %v250
    %v265 = vpack.c.b16 %v253, %v252
    %v266 = vpack.c.b16 %v255, %v254
    %v267 = vpack.c.b16 %v257, %v256
    %v268 = vpack.c.b16 %v259, %v258
    %v269 = vpack.c.b16 %v261, %v260
    %278 = vmatpush.bf16.msra.mxu0 %v269
    %279 = vmatpush.bf16.msra.mxu0 %v268
    %280 = vmatpush.bf16.msra.mxu0 %v267
    %281 = vmatpush.bf16.msra.mxu0 %v266
    %282 = vmatpush.bf16.msra.mxu0 %v265
    %283 = vmatpush.bf16.msra.mxu0 %v264
    %284 = vmatpush.bf16.msra.mxu0 %v263
    %285 = vmatpush.bf16.msra.mxu0 %v262
    %286 = vmatmul.bf16.gmra.mxu0 %v228
    %v287 = vpop.f32.mrf.mxu0
    %v288 = vadd.f32 %v229, %v287
    %v289 = vpop.f32.mrf.mxu0
    %290 = vdwg.mxu0
    %v291 = vmul.f32 %v288, 0.5
    %v292 = vmul.f32 %v288, 0.044715
    %v293 = vmul.f32 %v292, %v288
    %v294 = vmul.f32 %v293, %v288
    %v295 = vadd.f32 %v288, %v294
    %v296 = vmul.f32 %v295, 0.7978846
    %v297 = vtanh.pop %v296
    %v298 = vadd.f32 %v297, 1.0
    %v299 = vmul.f32 %v291, %v298
    %300 = vadd.xlane.f32.xlu0 %v299
    %v301 = vpop.xlane.xlu0 %300
    %v302 = vmul.f32 %v301, %v209
    %v303 = vsub.f32 %v299, %v302
    %v304 = vmul.f32 %v303, %v303
    %305 = vadd.xlane.f32.xlu0 %v304
    %v306 = vpop.xlane.xlu0 %305
    %v307 = vmul.f32 %v306, %v209
    %v308 = vadd.f32 %v307, 1e-05
    %v309 = vrsqrt.pop %v308
    %v310 = vmul.f32 %v309, %v308
    %v311 = vmul.f32 %v310, %v309
    %v312 = vmul.f32 0.5, %v311
    %v313 = vsub.f32 1.5, %v312
    %v314 = vmul.f32 %v309, %v313
    %vm315 = vweird.f32 %v308
    %vm316 = vweird.f32 %v309
    %vm317 = vmor %vm315, %vm316
    %v318 = vsel %vm317, %v309, %v314
    %v319 = vmul.f32 %v303, %v318
    %v320 = vpack.c.bf16 %v319, %v319
    %v321 = vld [vmem:[#allocation5] sm:$0xff]
    %v322 = vpack.c.bf16 %v321, %v321
    %v324 = vsel %vm175, %v322, 0
    %326 = vmatpush.bf16.msra.mxu0 0
    %327 = vmatpush.bf16.msra.mxu0 0
    %328 = vmatpush.bf16.msra.mxu0 0
    %329 = vmatpush.bf16.msra.mxu0 0
    %330 = vmatpush.bf16.msra.mxu0 0
    %331 = vmatpush.bf16.msra.mxu0 0
    %332 = vmatpush.bf16.msra.mxu0 %v172
    %333 = vmatpush.bf16.msra.mxu0 %v171
    %334 = vmatmul.bf16.gmra.mxu0 %v324
    %v335 = vpop.f32.mrf.mxu0
    %v336 = vadd.f32 %v162, %v335
    %v337 = vpop.f32.mrf.mxu0
    %338 = vdwg.mxu0
    %v339 = vmul.f32 %v336, 0.5
    %v340 = vmul.f32 %v336, 0.044715
    %v341 = vmul.f32 %v340, %v336
    %v342 = vmul.f32 %v341, %v336
    %v343 = vadd.f32 %v336, %v342
    %v344 = vmul.f32 %v343, 0.7978846
    %v345 = vtanh.pop %v344
    %v346 = vadd.f32 %v345, 1.0
    %v347 = vmul.f32 %v339, %v346
    %348 = vadd.xlane.f32.xlu0 %v347
    %v349 = vpop.xlane.xlu0 %348
    %v350 = vmul.f32 %v349, %v209
    %v351 = vsub.f32 %v347, %v350
    %v352 = vmul.f32 %v351, %v351
    %353 = vadd.xlane.f32.xlu0 %v352
    %v354 = vpop.xlane.xlu0 %353
    %v355 = vmul.f32 %v354, %v209
    %v356 = vadd.f32 %v355, 1e-05
    %v357 = vrsqrt.pop %v356
    %v358 = vmul.f32 %v357, %v356
    %v359 = vmul.f32 %v358, %v357
    %v360 = vmul.f32 0.5, %v359
    %v361 = vsub.f32 1.5, %v360
    %v362 = vmul.f32 %v357, %v361
    %vm363 = vweird.f32 %v356
    %vm364 = vweird.f32 %v357
    %vm365 = vmor %vm363, %vm364
    %v366 = vsel %vm365, %v357, %v362
    %v367 = vmul.f32 %v351, %v366
    %v368 = vpack.c.bf16 %v367, %v367
    %369 = vmatpush.bf16.msra.mxu0 %v269
    %370 = vmatpush.bf16.msra.mxu0 %v268
    %371 = vmatpush.bf16.msra.mxu0 %v267
    %372 = vmatpush.bf16.msra.mxu0 %v266
    %373 = vmatpush.bf16.msra.mxu0 %v265
    %374 = vmatpush.bf16.msra.mxu0 %v264
    %375 = vmatpush.bf16.msra.mxu0 %v263
    %376 = vmatpush.bf16.msra.mxu0 %v262
    %377 = vmatmul.bf16.gmra.mxu0 %v368
    %v378 = vpop.f32.mrf.mxu0
    %v379 = vadd.f32 %v229, %v378
    %v380 = vpop.f32.mrf.mxu0
    %381 = vdwg.mxu0
    %v382 = vmul.f32 %v379, 0.5
    %v383 = vmul.f32 %v379, 0.044715
    %v384 = vmul.f32 %v383, %v379
    %v385 = vmul.f32 %v384, %v379
    %v386 = vadd.f32 %v379, %v385
    %v387 = vmul.f32 %v386, 0.7978846
    %v388 = vtanh.pop %v387
    %v389 = vadd.f32 %v388, 1.0
    %v390 = vmul.f32 %v382, %v389
    %391 = vadd.xlane.f32.xlu0 %v390
    %v392 = vpop.xlane.xlu0 %391
    %v393 = vmul.f32 %v392, %v209
    %v394 = vsub.f32 %v390, %v393
    %v395 = vmul.f32 %v394, %v394
    %396 = vadd.xlane.f32.xlu0 %v395
    %v397 = vpop.xlane.xlu0 %396
    %v398 = vmul.f32 %v397, %v209
    %v399 = vadd.f32 %v398, 1e-05
    %v400 = vrsqrt.pop %v399
    %v401 = vmul.f32 %v400, %v399
    %v402 = vmul.f32 %v401, %v400
    %v403 = vmul.f32 0.5, %v402
    %v404 = vsub.f32 1.5, %v403
    %v405 = vmul.f32 %v400, %v404
    %vm406 = vweird.f32 %v399
    %vm407 = vweird.f32 %v400
    %vm408 = vmor %vm406, %vm407
    %v409 = vsel %vm408, %v400, %v405
    %v410 = vmul.f32 %v394, %v409
    %v411 = vpack.c.bf16 %v410, %v410
    %v412 = vld [vmem:[#allocation10] sm:$0xf]
    %v413 = vld [vmem:[#allocation10 + $0x4] sm:$0xf]
    %v414 = vld [vmem:[#allocation10 + $0x8] sm:$0xf]
    %v415 = vld [vmem:[#allocation10 + $0xc] sm:$0xf]
    %v416 = vld [vmem:[#allocation10 + $0x10] sm:$0xf]
    %v417 = vld [vmem:[#allocation10 + $0x14] sm:$0xf]
    %v418 = vld [vmem:[#allocation10 + $0x18] sm:$0xf]
    %v419 = vld [vmem:[#allocation10 + $0x1c] sm:$0xf]
    %v420 = vld [vmem:[#allocation10 + $0x20] sm:$0xf]
    %v421 = vld [vmem:[#allocation10 + $0x24] sm:$0xf]
    %v422 = vld [vmem:[#allocation10 + $0x28] sm:$0xf]
    %v423 = vld [vmem:[#allocation10 + $0x2c] sm:$0xf]
    %v424 = vld [vmem:[#allocation10 + $0x30] sm:$0xf]
    %v425 = vld [vmem:[#allocation10 + $0x34] sm:$0xf]
    %v426 = vld [vmem:[#allocation10 + $0x38] sm:$0xf]
    %v427 = vld [vmem:[#allocation10 + $0x3c] sm:$0xf]
    %v428 = vld [vmem:[#allocation11] sm:$0xf]
    %v429 = vld [vmem:[#allocation11 + $0x4] sm:$0xf]
    %v430 = vld [vmem:[#allocation11 + $0x8] sm:$0xf]
    %v431 = vld [vmem:[#allocation11 + $0xc] sm:$0xf]
    %v432 = vld [vmem:[#allocation11 + $0x10] sm:$0xf]
    %v433 = vld [vmem:[#allocation11 + $0x14] sm:$0xf]
    %v434 = vld [vmem:[#allocation11 + $0x18] sm:$0xf]
    %v435 = vld [vmem:[#allocation11 + $0x1c] sm:$0xf]
    %v436 = vld [vmem:[#allocation11 + $0x20] sm:$0xf]
    %v437 = vld [vmem:[#allocation11 + $0x24] sm:$0xf]
    %v438 = vld [vmem:[#allocation11 + $0x28] sm:$0xf]
    %v439 = vld [vmem:[#allocation11 + $0x2c] sm:$0xf]
    %v440 = vld [vmem:[#allocation11 + $0x30] sm:$0xf]
    %v441 = vld [vmem:[#allocation11 + $0x34] sm:$0xf]
    %v442 = vld [vmem:[#allocation11 + $0x38] sm:$0xf]
    %v443 = vld [vmem:[#allocation11 + $0x3c] sm:$0xf]
    %v460 = vunpack.c.l.b16 %v428
    %v461 = vunpack.c.l.b16 %v429
    %v462 = vunpack.c.l.b16 %v430
    %v463 = vunpack.c.l.b16 %v431
    %v464 = vunpack.c.l.b16 %v432
    %v465 = vunpack.c.l.b16 %v433
    %v466 = vunpack.c.l.b16 %v434
    %v467 = vunpack.c.l.b16 %v435
    %v468 = vunpack.c.l.b16 %v436
    %v469 = vunpack.c.l.b16 %v437
    %v470 = vunpack.c.l.b16 %v438
    %v471 = vunpack.c.l.b16 %v439
    %v472 = vunpack.c.l.b16 %v440
    %v473 = vunpack.c.l.b16 %v441
    %v474 = vunpack.c.l.b16 %v442
    %v475 = vunpack.c.l.b16 %v443
    %v476 = vpack.c.b16 %v461, %v460
    %v477 = vpack.c.b16 %v463, %v462
    %v478 = vpack.c.b16 %v465, %v464
    %v479 = vpack.c.b16 %v467, %v466
    %v480 = vpack.c.b16 %v469, %v468
    %v481 = vpack.c.b16 %v471, %v470
    %v482 = vpack.c.b16 %v473, %v472
    %v483 = vpack.c.b16 %v475, %v474
    %492 = vmatpush.bf16.msra.mxu0 %v483
    %493 = vmatpush.bf16.msra.mxu0 %v482
    %494 = vmatpush.bf16.msra.mxu0 %v481
    %495 = vmatpush.bf16.msra.mxu0 %v480
    %496 = vmatpush.bf16.msra.mxu0 %v479
    %497 = vmatpush.bf16.msra.mxu0 %v478
    %498 = vmatpush.bf16.msra.mxu0 %v477
    %499 = vmatpush.bf16.msra.mxu0 %v476
    %500 = vmatmul.bf16.gmra.mxu0 %v411
    %v501 = vpop.f32.mrf.mxu0
    %v502 = vadd.f32 0.0, %v501
    %v503 = vpop.f32.mrf.mxu0
    %504 = vdwg.mxu0
    %v521 = vunpack.c.l.b16 %v412
    %v522 = vunpack.c.l.b16 %v413
    %v523 = vunpack.c.l.b16 %v414
    %v524 = vunpack.c.l.b16 %v415
    %v525 = vunpack.c.l.b16 %v416
    %v526 = vunpack.c.l.b16 %v417
    %v527 = vunpack.c.l.b16 %v418
    %v528 = vunpack.c.l.b16 %v419
    %v529 = vunpack.c.l.b16 %v420
    %v530 = vunpack.c.l.b16 %v421
    %v531 = vunpack.c.l.b16 %v422
    %v532 = vunpack.c.l.b16 %v423
    %v533 = vunpack.c.l.b16 %v424
    %v534 = vunpack.c.l.b16 %v425
    %v535 = vunpack.c.l.b16 %v426
    %v536 = vunpack.c.l.b16 %v427
    %v537 = vpack.c.b16 %v522, %v521
    %v538 = vpack.c.b16 %v524, %v523
    %v539 = vpack.c.b16 %v526, %v525
    %v540 = vpack.c.b16 %v528, %v527
    %v541 = vpack.c.b16 %v530, %v529
    %v542 = vpack.c.b16 %v532, %v531
    %v543 = vpack.c.b16 %v534, %v533
    %v544 = vpack.c.b16 %v536, %v535
    %553 = vmatpush.bf16.msra.mxu0 %v544
    %554 = vmatpush.bf16.msra.mxu0 %v543
    %555 = vmatpush.bf16.msra.mxu0 %v542
    %556 = vmatpush.bf16.msra.mxu0 %v541
    %557 = vmatpush.bf16.msra.mxu0 %v540
    %558 = vmatpush.bf16.msra.mxu0 %v539
    %559 = vmatpush.bf16.msra.mxu0 %v538
    %560 = vmatpush.bf16.msra.mxu0 %v537
    %561 = vmatmul.bf16.gmra.mxu0 %v320
    %v562 = vpop.f32.mrf.mxu0
    %v563 = vadd.f32 %v502, %v562
    %v564 = vpop.f32.mrf.mxu0
    %565 = vdwg.mxu0
    %v566 = vperm.slane %v158, 0
    %v567 = vadd.f32 %v563, %v566
    %v568 = vmul.f32 %v567, 0.5
    %v569 = vmul.f32 %v567, 0.044715
    %v570 = vmul.f32 %v569, %v567
    %v571 = vmul.f32 %v570, %v567
    %v572 = vadd.f32 %v567, %v571
    %v573 = vmul.f32 %v572, 0.7978846
    %v574 = vtanh.pop %v573
    %v575 = vadd.f32 %v574, 1.0
    %v576 = vmul.f32 %v568, %v575
    %v577 = vpack.c.bf16 %v576, %v576
    %v578 = vld [vmem:[#allocation13] sm:$0xf]
    %v579 = vld [vmem:[#allocation13 + $0x4] sm:$0xf]
    %v580 = vld [vmem:[#allocation13 + $0x8] sm:$0xf]
    %v581 = vld [vmem:[#allocation13 + $0xc] sm:$0xf]
    %v582 = vld [vmem:[#allocation13 + $0x10] sm:$0xf]
    %v583 = vld [vmem:[#allocation13 + $0x14] sm:$0xf]
    %v584 = vld [vmem:[#allocation13 + $0x18] sm:$0xf]
    %v585 = vld [vmem:[#allocation13 + $0x1c] sm:$0xf]
    %v586 = vld [vmem:[#allocation13 + $0x20] sm:$0xf]
    %v587 = vld [vmem:[#allocation13 + $0x24] sm:$0xf]
    %v588 = vld [vmem:[#allocation13 + $0x28] sm:$0xf]
    %v589 = vld [vmem:[#allocation13 + $0x2c] sm:$0xf]
    %v590 = vld [vmem:[#allocation13 + $0x30] sm:$0xf]
    %v591 = vld [vmem:[#allocation13 + $0x34] sm:$0xf]
    %v592 = vld [vmem:[#allocation13 + $0x38] sm:$0xf]
    %v593 = vld [vmem:[#allocation13 + $0x3c] sm:$0xf]
    %v594 = vperm.slane %v159, 0
    %v611 = vunpack.c.l.b16 %v578
    %v612 = vunpack.c.l.b16 %v579
    %v613 = vunpack.c.l.b16 %v580
    %v614 = vunpack.c.l.b16 %v581
    %v615 = vunpack.c.l.b16 %v582
    %v616 = vunpack.c.l.b16 %v583
    %v617 = vunpack.c.l.b16 %v584
    %v618 = vunpack.c.l.b16 %v585
    %v619 = vunpack.c.l.b16 %v586
    %v620 = vunpack.c.l.b16 %v587
    %v621 = vunpack.c.l.b16 %v588
    %v622 = vunpack.c.l.b16 %v589
    %v623 = vunpack.c.l.b16 %v590
    %v624 = vunpack.c.l.b16 %v591
    %v625 = vunpack.c.l.b16 %v592
    %v626 = vunpack.c.l.b16 %v593
    %v627 = vpack.c.b16 %v612, %v611
    %v628 = vpack.c.b16 %v614, %v613
    %v629 = vpack.c.b16 %v616, %v615
    %v630 = vpack.c.b16 %v618, %v617
    %v631 = vpack.c.b16 %v620, %v619
    %v632 = vpack.c.b16 %v622, %v621
    %v633 = vpack.c.b16 %v624, %v623
    %v634 = vpack.c.b16 %v626, %v625
    %643 = vmatpush.bf16.msra.mxu0 %v634
    %644 = vmatpush.bf16.msra.mxu0 %v633
    %645 = vmatpush.bf16.msra.mxu0 %v632
    %646 = vmatpush.bf16.msra.mxu0 %v631
    %647 = vmatpush.bf16.msra.mxu0 %v630
    %648 = vmatpush.bf16.msra.mxu0 %v629
    %649 = vmatpush.bf16.msra.mxu0 %v628
    %650 = vmatpush.bf16.msra.mxu0 %v627
    %651 = vmatmul.bf16.gmra.mxu0 %v577
    %v652 = vpop.f32.mrf.mxu0
    %v653 = vadd.f32 %v594, %v652
    %v654 = vpop.f32.mrf.mxu0
    %655 = vdwg.mxu0
    %656 = vst [vmem:[#allocation14] sm:$0xff] %v653
    // Predicated region
    $region62: #{output_head.1} parent=1 // pred_check
      _
    $region63: #{output_head.1} parent=1 // pred_check_branch
      %658 = sbr.rel (0) target = $region65
    $region64: #{output_head.1} parent=1 // pred_region
      %660 = vsyncadd [#allocation4], 0
      %s662 = sshll.u32 [#allocation14], 4
      %s663 = int_to_ptr.vmem [resolvable:$true] %s662
      %s664 = sshll.u32 %s8, 4
      %s665 = int_to_ptr.hbm [resolvable:$true] %s664
      %667 = dma.vmem_to_hbm [thread:$0]  %s663, 128, %s665, [#allocation4]
    $region65: #{output_head.1} parent=1 // pred_fallthru
      _
    // Predicated region
    $region66: #{output_head.1} parent=1 // pred_check
      _
    $region67: #{output_head.1} parent=1 // pred_check_branch
      %669 = sbr.rel (0) target = $region69
    $region68: #{output_head.1} parent=1 // pred_region
      %671 = dma.done [#allocation4], 128
    $region69: #{output_head.1} parent=1 // pred_fallthru
      _
    %672 = vsyncpa [#allocation3], 1
    %673 = vsyncpa [#allocation6], 1
    %674 = vsyncpa [#allocation9], 1
    %675 = vsyncpa [#allocation12], 1
    %676 = vsyncpa [#allocation4], 1

</llo_original>
